<compile_context>
chip_gen: v7x
topology: tpu7x:2x2x1
jax: 0.10.0
libtpu: 0.0.40
codegen_flags: <defaults>
</compile_context>

<pallas_src>
import jax
import jax.numpy as jnp
import numpy as np
from jax.experimental import pallas as pl
from jax.experimental.pallas import tpu as pltpu


def res_layer_long_kernel(xi_ref, g_ref, w_ref, b_ref, x_ref, o_ref):
    # xi_ref: (1, C_in, Ki)   low-res x_i for this batch element (Ki = H_i*W_i)
    # g_ref : (Ki, TM)        one-hot nearest-upsample selection columns
    # w_ref : (C_out, C_in)   1x1 conv weight
    # b_ref : (C_out, 1)      bias
    # x_ref : (1, C_out, TM)  residual tile
    # o_ref : (1, C_out, TM)  output tile (aliased with x_ref's buffer)
    xi_up = jnp.dot(xi_ref[0], g_ref[...],
                    preferred_element_type=jnp.float32)          # (C_in, TM)
    conv = jnp.dot(w_ref[...], xi_up,
                   preferred_element_type=jnp.float32)           # (C_out, TM)
    o_ref[0] = (conv + b_ref[...] + x_ref[0]).astype(o_ref.dtype)


def _pick_tm(m, max_tile=2048):
    """Lane-tile size: full M if it fits, else a 128-multiple divisor of M."""
    if m <= max_tile:
        return m
    t = max_tile - (max_tile % 128)
    while t >= 128:
        if m % t == 0:
            return t
        t -= 128
    return m  # fall back to one full-width block (spatial dims are small here)


def res_layer_long(x_i, x, weight, bias, *, max_tile=2048):
    """Pallas implementation of ResLayer_long.forward.

    x_i    : (N, C_in, H_i, W_i)  float32, NCHW
    x      : (N, C_out, H, W)     float32, NCHW
    weight : (C_out, C_in, 1, 1)  float32
    bias   : (C_out,)             float32
    returns: (N, C_out, H, W)     float32
    """
    N, C_in, H_i, W_i = x_i.shape
    _, C_out, H, W = x.shape
    Ki = H_i * W_i
    M = H * W

    # PyTorch 'nearest': src = floor(dst * in / out)  -- exact integer math.
    h_idx = (np.arange(H) * H_i) // H
    w_idx = (np.arange(W) * W_i) // W
    flat_src = (h_idx[:, None] * W_i + w_idx[None, :]).reshape(-1)   # (M,)
    # One-hot selection matrix:  xi_low(C, Ki) @ G(Ki, M) == nearest-upsampled xi.
    g = jnp.asarray(np.eye(Ki, dtype=np.float32)[flat_src].T)        # (Ki, M)

    # NCHW -> (N, C, H*W): pure reshapes, no transposes.
    xi_flat = x_i.reshape(N, C_in, Ki)
    x_flat = x.reshape(N, C_out, M)
    w2d = weight.reshape(C_out, C_in)
    b2d = bias.reshape(C_out, 1)

    TM = _pick_tm(M, max_tile)
    grid = (N, M // TM)

    out_flat = pl.pallas_call(
        res_layer_long_kernel,
        out_shape=jax.ShapeDtypeStruct((N, C_out, M), x.dtype),
        grid=grid,
        in_specs=[
            pl.BlockSpec((1, C_in, Ki), lambda n, j: (n, 0, 0)),   # low-res x_i
            pl.BlockSpec((Ki, TM), lambda n, j: (0, j)),           # selection G
            pl.BlockSpec((C_out, C_in), lambda n, j: (0, 0)),      # weight
            pl.BlockSpec((C_out, 1), lambda n, j: (0, 0)),         # bias
            pl.BlockSpec((1, C_out, TM), lambda n, j: (n, 0, j)),  # residual x
        ],
        out_specs=pl.BlockSpec((1, C_out, TM), lambda n, j: (n, 0, j)),
        compiler_params=pltpu.CompilerParams(
            dimension_semantics=("parallel", "parallel"),
        ),
        input_output_aliases={4: 0},  # overwrite the residual buffer in place
    )(xi_flat, g, w2d, b2d, x_flat)

    return out_flat.reshape(N, C_out, H, W)


def _reference(x_i, x, weight, bias):
    """Pure-JAX reference mirroring PyTorch semantics (conv -> nearest -> add)."""
    N, C_in, H_i, W_i = x_i.shape
    _, C_out, H, W = x.shape
    w2d = weight.reshape(C_out, C_in)
    conv = jnp.einsum('nchw,oc->nohw', x_i, w2d) + bias.reshape(1, C_out, 1, 1)
    h_idx = (jnp.arange(H) * H_i) // H
    w_idx = (jnp.arange(W) * W_i) // W
    conv = conv[:, :, h_idx, :][:, :, :, w_idx]
    return conv + x


if __name__ == "__main__":
    key = jax.random.PRNGKey(0)
    k1, k2, k3, k4 = jax.random.split(key, 4)

    # ResLayer_long(in_c_x0=4, in_c=<unused>, out_c=8)
    N, C_in, C_out = 2, 4, 8
    H_i, W_i = 8, 8      # x_i spatial
    H, W = 16, 16        # x spatial (interpolation target)

    x_i = jax.random.normal(k1, (N, C_in, H_i, W_i), dtype=jnp.float32)
    x = jax.random.normal(k2, (N, C_out, H, W), dtype=jnp.float32)
    weight = jax.random.normal(k3, (C_out, C_in, 1, 1), dtype=jnp.float32) * 0.1
    bias = jax.random.normal(k4, (C_out,), dtype=jnp.float32) * 0.1

    # Compute the reference first (the kernel aliases its residual operand's buffer).
    ref = jax.block_until_ready(_reference(x_i, x, weight, bias))

    out = jax.block_until_ready(res_layer_long(x_i, x, weight, bias))

    assert out.shape == (N, C_out, H, W)
    assert jnp.allclose(out, ref, atol=1e-5, rtol=1e-5), float(
        jnp.max(jnp.abs(out - ref)))

    print("KERNEL_OK")
</pallas_src>

<mosaic_0001>
module attributes {stable_mosaic.version = 11 : i64} {
  func.func @res_layer_long_kernel(%arg0: i32, %arg1: i32, %arg2: memref<1x4x64xf32, #tpu.memory_space<vmem>>, %arg3: memref<64x256xf32, #tpu.memory_space<vmem>>, %arg4: memref<8x4xf32, #tpu.memory_space<vmem>>, %arg5: memref<8x1xf32, #tpu.memory_space<vmem>>, %arg6: memref<1x8x256xf32, #tpu.memory_space<vmem>>, %arg7: memref<1x8x256xf32, #tpu.memory_space<vmem>>) attributes {dimension_semantics = [#tpu.dimension_semantics<parallel>, #tpu.dimension_semantics<parallel>], iteration_bounds = array<i64: 2, 1>, scalar_prefetch = 0 : i64, scratch_operands = 0 : i64, tpu.core_type = #tpu.core_type<tc>, window_params = [{transform_indices = @transform_0, window_bounds = array<i64: 1, 4, 64>}, {transform_indices = @transform_1, window_bounds = array<i64: 64, 256>}, {pipeline_mode = #tpu.pipeline_mode<synchronous>, transform_indices = @transform_2, window_bounds = array<i64: 8, 4>}, {pipeline_mode = #tpu.pipeline_mode<synchronous>, transform_indices = @transform_3, window_bounds = array<i64: 8, 1>}, {transform_indices = @transform_4, window_bounds = array<i64: 1, 8, 256>}, {transform_indices = @transform_5, window_bounds = array<i64: 1, 8, 256>}]} {
    %c0 = arith.constant 0 : index
    %c0_0 = arith.constant 0 : index
    %c0_1 = arith.constant 0 : index
    %0 = vector.load %arg2[%c0, %c0_0, %c0_1] : memref<1x4x64xf32, #tpu.memory_space<vmem>>, vector<1x4x64xf32>
    %1 = vector.shape_cast %0 : vector<1x4x64xf32> to vector<4x64xf32>
    %c0_2 = arith.constant 0 : index
    %c0_3 = arith.constant 0 : index
    %2 = vector.load %arg3[%c0_2, %c0_3] : memref<64x256xf32, #tpu.memory_space<vmem>>, vector<64x256xf32>
    %cst = arith.constant dense<0.000000e+00> : vector<4x256xf32>
    %3 = tpu.matmul %1, %2, %cst {dimension_numbers = #tpu.dot_dimension_numbers<[1], [0], [0], [1], [0, 0, 1, 1], [], []>} : vector<4x64xf32>, vector<64x256xf32>, vector<4x256xf32> -> vector<4x256xf32>
    %c0_4 = arith.constant 0 : index
    %c0_5 = arith.constant 0 : index
    %4 = vector.load %arg4[%c0_4, %c0_5] : memref<8x4xf32, #tpu.memory_space<vmem>>, vector<8x4xf32>
    %cst_6 = arith.constant dense<0.000000e+00> : vector<8x256xf32>
    %5 = tpu.matmul %4, %3, %cst_6 {dimension_numbers = #tpu.dot_dimension_numbers<[1], [0], [0], [1], [0, 0, 1, 1], [], []>} : vector<8x4xf32>, vector<4x256xf32>, vector<8x256xf32> -> vector<8x256xf32>
    %c0_7 = arith.constant 0 : index
    %c0_8 = arith.constant 0 : index
    %6 = vector.load %arg5[%c0_7, %c0_8] : memref<8x1xf32, #tpu.memory_space<vmem>>, vector<8x1xf32>
    %7 = vector.broadcast %6 : vector<8x1xf32> to vector<8x256xf32>
    %8 = arith.addf %5, %7 : vector<8x256xf32>
    %c0_9 = arith.constant 0 : index
    %c0_10 = arith.constant 0 : index
    %c0_11 = arith.constant 0 : index
    %9 = vector.load %arg6[%c0_9, %c0_10, %c0_11] : memref<1x8x256xf32, #tpu.memory_space<vmem>>, vector<1x8x256xf32>
    %10 = vector.shape_cast %9 : vector<1x8x256xf32> to vector<8x256xf32>
    %11 = arith.addf %8, %10 : vector<8x256xf32>
    %c0_12 = arith.constant 0 : index
    %c0_13 = arith.constant 0 : index
    %c0_14 = arith.constant 0 : index
    %12 = vector.load %arg7[%c0_12, %c0_13, %c0_14] : memref<1x8x256xf32, #tpu.memory_space<vmem>>, vector<1x8x256xf32>
    %13 = vector.shape_cast %12 : vector<1x8x256xf32> to vector<8x256xf32>
    %14 = vector.shape_cast %11 : vector<8x256xf32> to vector<1x8x256xf32>
    tpu.vector_store %arg7[%c0_12, %c0_13, %c0_14], %14 {strides = array<i32>} : memref<1x8x256xf32, #tpu.memory_space<vmem>>, vector<1x8x256xf32>,
    return
  }
  func.func @transform_0(%arg0: i32, %arg1: i32) -> (i32, i32, i32) {
    %c0_i32 = arith.constant 0 : i32
    %c0_i32_0 = arith.constant 0 : i32
    %c0_i32_1 = arith.constant 0 : i32
    return %arg0, %c0_i32, %c0_i32_0 : i32, i32, i32
  }
  func.func @transform_1(%arg0: i32, %arg1: i32) -> (i32, i32) {
    %c0_i32 = arith.constant 0 : i32
    %c0_i32_0 = arith.constant 0 : i32
    return %c0_i32, %arg1 : i32, i32
  }
  func.func @transform_2(%arg0: i32, %arg1: i32) -> (i32, i32) {
    %c0_i32 = arith.constant 0 : i32
    %c0_i32_0 = arith.constant 0 : i32
    %c0_i32_1 = arith.constant 0 : i32
    return %c0_i32, %c0_i32_0 : i32, i32
  }
  func.func @transform_3(%arg0: i32, %arg1: i32) -> (i32, i32) {
    %c0_i32 = arith.constant 0 : i32
    %c0_i32_0 = arith.constant 0 : i32
    %c0_i32_1 = arith.constant 0 : i32
    return %c0_i32, %c0_i32_0 : i32, i32
  }
  func.func @transform_4(%arg0: i32, %arg1: i32) -> (i32, i32, i32) {
    %c0_i32 = arith.constant 0 : i32
    %c0_i32_0 = arith.constant 0 : i32
    return %arg0, %c0_i32, %arg1 : i32, i32, i32
  }
  func.func @transform_5(%arg0: i32, %arg1: i32) -> (i32, i32, i32) {
    %c0_i32 = arith.constant 0 : i32
    %c0_i32_0 = arith.constant 0 : i32
    return %arg0, %c0_i32, %arg1 : i32, i32, i32
  }
}

</mosaic_0001>

<llo_original>
// kernel: tpu_custom_call.1
$region0: #{tpu_custom_call.1}
  #allocation0 [shape = 'u32[]', space=smem, size = 0x4, offset = 0x4, fixed_abs, tag = 'smem constant byte address 0x4 - core index']
  #allocation1 [shape = 'u32[144,128]{1,0:T(1,128)}', space=vmem, size = 0x12000, scoped, tag = 'internal scratch']
  %s0 = inlined_call_operand.vmem [shape: f32[2,4,64], index: 0, kind: input, shape index: {}]
  %s1 = inlined_call_operand.hbm [shape: f32[64,256], index: 1, kind: input, shape index: {}]
  %s2 = inlined_call_operand.vmem [shape: f32[8,4], index: 2, kind: input, shape index: {}]
  %s3 = inlined_call_operand.vmem [shape: f32[8,1], index: 3, kind: input, shape index: {}]
  %s4 = inlined_call_operand.hbm [shape: f32[2,8,256], index: 4, kind: input, shape index: {}, may-alias: {4,5}]
  %s5 = inlined_call_operand.hbm [shape: f32[2,8,256], index: 5, kind: output, shape index: {}, may-alias: {4,5}]
  %s6 = sld [smem:[#allocation0]]
  $region61: #{tpu_custom_call.1} parent=0
    _
  %s8 = ssub.s32 1, %s6
  %s9 = scalar_select 0, %s8, %s6
  $region1: #{tpu_custom_call.1} parent=0
    #allocation2 [shape = 'u8[65536]{0}', space=vmem, size = 0x10000, scoped, tag = 'input window, operand 1, single buffered']
    #allocation3 [shape = 's32[2]{0}', space=sflag, size = 0x8, scoped, tag = 'scoped memory for tpu_custom_call.1']
    #allocation4 [shape = 's32[2]{0}', space=sflag, size = 0x8, scoped, tag = 'scoped memory for tpu_custom_call.1']
    #allocation5 [shape = 'u8[16384]{0}', space=vmem, size = 0x4000, scoped, tag = 'input window, operand 4']
    #allocation6 [shape = 's32[2]{0}', space=sflag, size = 0x8, scoped, tag = 'scoped memory for tpu_custom_call.1']
    #allocation7 [shape = 'u8[16384]{0}', space=vmem, size = 0x4000, scoped, tag = 'output window, operand 0']
    %10 = vsyncpa [#allocation3], 0
    %11 = vsyncpa [#allocation6], 0
    %s12 = scalar_lea.sflag [#allocation6], 1
    %13 = vsyncpa %s12, 0
    %14 = vsyncpa [#allocation4], 0
    %s15 = scalar_lea.sflag [#allocation4], 1
    %16 = vsyncpa %s15, 0
    loop: start=0, step=1, limit=4
    $region2: #{tpu_custom_call.1} parent=1 // loop_pre_header
      _
    $region3: #{tpu_custom_call.1} parent=1 // loop_header
      %s18 = sphi 0, %s22
      %p19 = scmp.ge.s32.totalorder %s18, 4
      %s25 = sphi 0, %s37
      %s26 = sphi 0, %s33
      %s27 = sphi 0, %s25
      %s28 = sphi 0, %s26
      %s29 = sphi 0, %s27
      %s30 = sphi 0, %s28
      %s40 = sphi 0, %s42
      %s43 = sphi 0, %s40
      %s44 = sphi 0, %s43
      %s60 = sphi 0, %s44
      %s66 = sphi 0, %s68
      %s69 = sphi 0, %s66
      %s70 = sphi 0, %s69
      %s86 = sphi 0, %s70
      %s90 = sphi 0, %s90
      %s92 = sphi 0, %s90
      %s93 = sphi 0, %s92
      %s107 = sphi 0, %s93
      %s111 = sphi 0, %s111
      %s113 = sphi 0, %s111
      %s114 = sphi 0, %s113
      %s128 = sphi 0, %s114
      %s136 = sphi 0, %s138
      %s139 = sphi 0, %s136
      %s140 = sphi 0, %s139
      %s156 = sphi 0, %s140
      %s164 = sphi 0, %s166
      %s167 = sphi 0, %s164
      %s168 = sphi 0, %s167
      %s184 = sphi 0, %s168
    $region4: #{tpu_custom_call.1} parent=1 // loop_header_branch
      %21 = sbr.rel (%p19) target = $region8
    $region5: #{tpu_custom_call.1} parent=1 // loop_body
      %s23 = ssub.s32 %s18, 1
      %s24 = ssub.s32 %s18, 2
      %s31 = sadd.s32 1, %s26
      %p32 = scmp.ge.s32.totalorder %s31, 1
      %s33 = scalar_select %p32, 0, %s31
      %s34 = sadd.s32 1, %s25
      %s35 = scalar_select %p32, %s34, %s25
      %p36 = scmp.ge.s32.totalorder %s35, 2
      %s37 = scalar_select %p36, 0, %s35
      %s38 = ssub.s32 %s25, %s37
      %p39 = scmp.eq.s32.totalorder %s38, 0
      %s41 = sadd.s32 %s40, 1
      %s42 = scalar_select %p39, %s40, %s41
      %p45 = pneg %p39
      %p46 = scmp.eq.s32.totalorder %s18, 1
      %p47 = por %p45, %p46
      %p48 = scmp.ne.s32.totalorder %s40, %s43
      %p49 = scmp.eq.s32.totalorder %s18, 0
      %p50 = por %p48, %p49
      %p51 = scmp.ne.s32.totalorder %s40, %s43
      %p52 = scmp.eq.s32.totalorder %s23, 1
      %p53 = por %p51, %p52
      %p54 = scmp.ne.s32.totalorder %s43, %s44
      %p55 = scmp.eq.s32.totalorder %s23, 0
      %p56 = por %p54, %p55
      %p57 = scmp.ne.s32.totalorder %s43, %s44
      %p58 = scmp.eq.s32.totalorder %s24, 1
      %p59 = por %p57, %p58
      %p61 = scmp.ne.s32.totalorder %s44, %s60
      %p62 = scmp.eq.s32.totalorder %s24, 0
      %p63 = por %p61, %p62
      %s64 = ssub.s32 %s26, %s33
      %p65 = scmp.eq.s32.totalorder %s64, 0
      %s67 = sadd.s32 %s66, 1
      %s68 = scalar_select %p65, %s66, %s67
      %p71 = pneg %p65
      %p72 = scmp.eq.s32.totalorder %s18, 1
      %p73 = por %p71, %p72
      %p74 = scmp.ne.s32.totalorder %s66, %s69
      %p75 = scmp.eq.s32.totalorder %s18, 0
      %p76 = por %p74, %p75
      %p77 = scmp.ne.s32.totalorder %s66, %s69
      %p78 = scmp.eq.s32.totalorder %s23, 1
      %p79 = por %p77, %p78
      %p80 = scmp.ne.s32.totalorder %s69, %s70
      %p81 = scmp.eq.s32.totalorder %s23, 0
      %p82 = por %p80, %p81
      %p83 = scmp.ne.s32.totalorder %s69, %s70
      %p84 = scmp.eq.s32.totalorder %s24, 1
      %p85 = por %p83, %p84
      %p87 = scmp.ne.s32.totalorder %s70, %s86
      %p88 = scmp.eq.s32.totalorder %s24, 0
      %p89 = por %p87, %p88
      %s91 = sadd.s32 %s90, 1
      %p94 = scmp.eq.s32.totalorder %s18, 1
      %p95 = scmp.ne.s32.totalorder %s90, %s92
      %p96 = scmp.eq.s32.totalorder %s18, 0
      %p97 = por %p95, %p96
      %p98 = scmp.ne.s32.totalorder %s90, %s92
      %p99 = scmp.eq.s32.totalorder %s23, 1
      %p100 = por %p98, %p99
      %p101 = scmp.ne.s32.totalorder %s92, %s93
      %p102 = scmp.eq.s32.totalorder %s23, 0
      %p103 = por %p101, %p102
      %p104 = scmp.ne.s32.totalorder %s92, %s93
      %p105 = scmp.eq.s32.totalorder %s24, 1
      %p106 = por %p104, %p105
      %p108 = scmp.ne.s32.totalorder %s93, %s107
      %p109 = scmp.eq.s32.totalorder %s24, 0
      %p110 = por %p108, %p109
      %s112 = sadd.s32 %s111, 1
      %p115 = scmp.eq.s32.totalorder %s18, 1
      %p116 = scmp.ne.s32.totalorder %s111, %s113
      %p117 = scmp.eq.s32.totalorder %s18, 0
      %p118 = por %p116, %p117
      %p119 = scmp.ne.s32.totalorder %s111, %s113
      %p120 = scmp.eq.s32.totalorder %s23, 1
      %p121 = por %p119, %p120
      %p122 = scmp.ne.s32.totalorder %s113, %s114
      %p123 = scmp.eq.s32.totalorder %s23, 0
      %p124 = por %p122, %p123
      %p125 = scmp.ne.s32.totalorder %s113, %s114
      %p126 = scmp.eq.s32.totalorder %s24, 1
      %p127 = por %p125, %p126
      %p129 = scmp.ne.s32.totalorder %s114, %s128
      %p130 = scmp.eq.s32.totalorder %s24, 0
      %p131 = por %p129, %p130
      %s132 = ssub.s32 %s25, %s37
      %s133 = ssub.s32 %s26, %s33
      %s134 = sor.u32 %s132, %s133
      %p135 = scmp.eq.s32.totalorder %s134, 0
      %s137 = sadd.s32 %s136, 1
      %s138 = scalar_select %p135, %s136, %s137
      %p141 = pneg %p135
      %p142 = scmp.eq.s32.totalorder %s18, 1
      %p143 = por %p141, %p142
      %p144 = scmp.ne.s32.totalorder %s136, %s139
      %p145 = scmp.eq.s32.totalorder %s18, 0
      %p146 = por %p144, %p145
      %p147 = scmp.ne.s32.totalorder %s136, %s139
      %p148 = scmp.eq.s32.totalorder %s23, 1
      %p149 = por %p147, %p148
      %p150 = scmp.ne.s32.totalorder %s139, %s140
      %p151 = scmp.eq.s32.totalorder %s23, 0
      %p152 = por %p150, %p151
      %p153 = scmp.ne.s32.totalorder %s139, %s140
      %p154 = scmp.eq.s32.totalorder %s24, 1
      %p155 = por %p153, %p154
      %p157 = scmp.ne.s32.totalorder %s140, %s156
      %p158 = scmp.eq.s32.totalorder %s24, 0
      %p159 = por %p157, %p158
      %s160 = ssub.s32 %s25, %s37
      %s161 = ssub.s32 %s26, %s33
      %s162 = sor.u32 %s160, %s161
      %p163 = scmp.eq.s32.totalorder %s162, 0
      %s165 = sadd.s32 %s164, 1
      %s166 = scalar_select %p163, %s164, %s165
      %p169 = pneg %p163
      %p170 = scmp.eq.s32.totalorder %s18, 1
      %p171 = por %p169, %p170
      %p172 = scmp.ne.s32.totalorder %s164, %s167
      %p173 = scmp.eq.s32.totalorder %s18, 0
      %p174 = por %p172, %p173
      %p175 = scmp.ne.s32.totalorder %s164, %s167
      %p176 = scmp.eq.s32.totalorder %s23, 1
      %p177 = por %p175, %p176
      %p178 = scmp.ne.s32.totalorder %s167, %s168
      %p179 = scmp.eq.s32.totalorder %s23, 0
      %p180 = por %p178, %p179
      %p181 = scmp.ne.s32.totalorder %s167, %s168
      %p182 = scmp.eq.s32.totalorder %s24, 1
      %p183 = por %p181, %p182
      %p185 = scmp.ne.s32.totalorder %s168, %s184
      %p186 = scmp.eq.s32.totalorder %s24, 0
      %p187 = por %p185, %p186
      %p188 = scmp.le.s32.totalorder 1, %s18
      %p189 = scmp.lt.s32.totalorder %s18, 3
      %p190 = pnand %p188, %p189
      %p191 = pneg %p190
      // Predicated region
      $region9: #{tpu_custom_call.1} parent=5 // pred_check
        _
      $region10: #{tpu_custom_call.1} parent=5 // pred_check_branch
        %193 = sbr.rel (%p190) target = $region12
      $region11: #{tpu_custom_call.1} parent=5 // pred_region
        %s194 = ssub.s32 %s18, 1
        // Predicated region
        $region13: #{tpu_custom_call.1} parent=11 // pred_check
          %p195 = pneg %p82
        $region14: #{tpu_custom_call.1} parent=11 // pred_check_branch
          %197 = sbr.rel (%p195) target = $region16
        $region15: #{tpu_custom_call.1} parent=11 // pred_region
          %s198 = smul.u32 2, %s28
          %s200 = ssub.s32 2048, 2048
          %201 = vsyncadd [#allocation3], %s200
          %s202 = smul.addr %s198, 128
          %s203 = scalar_lea.hbm %s1, %s202
          %s204 = sshll.u32 [#allocation2], 4
          %s205 = int_to_ptr.vmem [resolvable:$true] %s204
          %210 = dma.hbm_to_vmem [thread:$0]  %s203, 2048, %s205, [#allocation3], 256, 256, 16
        $region16: #{tpu_custom_call.1} parent=11 // pred_fallthru
          _
        // Predicated region
        $region17: #{tpu_custom_call.1} parent=11 // pred_check
          %p211 = pneg %p103
        $region18: #{tpu_custom_call.1} parent=11 // pred_check_branch
          %213 = sbr.rel (%p211) target = $region20
        $region19: #{tpu_custom_call.1} parent=11 // pred_region
          _
        $region20: #{tpu_custom_call.1} parent=11 // pred_fallthru
          _
        // Predicated region
        $region21: #{tpu_custom_call.1} parent=11 // pred_check
          %p214 = pneg %p124
        $region22: #{tpu_custom_call.1} parent=11 // pred_check_branch
          %216 = sbr.rel (%p214) target = $region24
        $region23: #{tpu_custom_call.1} parent=11 // pred_region
          _
        $region24: #{tpu_custom_call.1} parent=11 // pred_fallthru
          _
      $region12: #{tpu_custom_call.1} parent=5 // pred_fallthru
        _
      %p217 = scmp.lt.s32.totalorder %s18, 2
      // Predicated region
      $region25: #{tpu_custom_call.1} parent=5 // pred_check
        %p218 = pneg %p217
      $region26: #{tpu_custom_call.1} parent=5 // pred_check_branch
        %220 = sbr.rel (%p218) target = $region28
      $region27: #{tpu_custom_call.1} parent=5 // pred_region
        // Predicated region
        $region29: #{tpu_custom_call.1} parent=27 // pred_check
          %p221 = pneg %p50
        $region30: #{tpu_custom_call.1} parent=27 // pred_check_branch
          %223 = sbr.rel (%p221) target = $region32
        $region31: #{tpu_custom_call.1} parent=27 // pred_region
          %p224 = scmp.lt.s32.totalorder %s25, 1
          %s225 = scalar_select %p224, %s25, 1
          %s226 = smul.addr %s225, 4
          %s227 = scalar_lea.vmem %s0, %s226
        $region32: #{tpu_custom_call.1} parent=27 // pred_fallthru
          _
        // Predicated region
        $region33: #{tpu_custom_call.1} parent=27 // pred_check
          %p228 = pneg %p146
        $region34: #{tpu_custom_call.1} parent=27 // pred_check_branch
          %230 = sbr.rel (%p228) target = $region36
        $region35: #{tpu_custom_call.1} parent=27 // pred_region
          %s231 = sand.u32 %s136, 1
          %s232 = scalar_lea.sflag [#allocation6], %s231
          %s233 = sand.u32 %s136, 1
          %s234 = smul.addr %s233, 16
          %s235 = scalar_lea.vmem [#allocation5], %s234
          %s236 = smul.u32 2, %s26
          %s238 = ssub.s32 256, 256
          %239 = vsyncadd %s232, %s238
          %s240 = smul.addr %s25, 2
          %s241 = sadd.s32 %s236, %s240
          %s242 = smul.addr %s241, 128
          %s243 = scalar_lea.hbm %s4, %s242
          %s245 = sshll.u32 %s235, 4
          %s246 = int_to_ptr.vmem [resolvable:$true] %s245
          %248 = dma.hbm_to_vmem [thread:$0]  %s243, 256, %s246, %s232
        $region36: #{tpu_custom_call.1} parent=27 // pred_fallthru
          _
      $region28: #{tpu_custom_call.1} parent=5 // pred_fallthru
        _
      %p249 = scmp.le.s32.totalorder 1, %s18
      %p250 = scmp.lt.s32.totalorder %s18, 3
      %p251 = pnand %p249, %p250
      %p252 = pneg %p251
      // Predicated region
      $region37: #{tpu_custom_call.1} parent=5 // pred_check
        _
      $region38: #{tpu_custom_call.1} parent=5 // pred_check_branch
        %254 = sbr.rel (%p251) target = $region40
      $region39: #{tpu_custom_call.1} parent=5 // pred_region
        %s255 = ssub.s32 %s18, 1
        // Predicated region
        $region41: #{tpu_custom_call.1} parent=39 // pred_check
          %p256 = pneg %p82
        $region42: #{tpu_custom_call.1} parent=39 // pred_check_branch
          %258 = sbr.rel (%p256) target = $region44
        $region43: #{tpu_custom_call.1} parent=39 // pred_region
          %259 = dma.done [#allocation3], 2048
        $region44: #{tpu_custom_call.1} parent=39 // pred_fallthru
          _
        %s260 = sand.u32 %s139, 1
        %s261 = scalar_lea.sflag [#allocation6], %s260
        %s262 = sand.u32 %s139, 1
        %s263 = smul.addr %s262, 16
        %s264 = scalar_lea.vmem [#allocation5], %s263
        // Predicated region
        $region45: #{tpu_custom_call.1} parent=39 // pred_check
          %p265 = pneg %p152
        $region46: #{tpu_custom_call.1} parent=39 // pred_check_branch
          %267 = sbr.rel (%p265) target = $region48
        $region47: #{tpu_custom_call.1} parent=39 // pred_region
          %268 = dma.done %s261, 256
        $region48: #{tpu_custom_call.1} parent=39 // pred_fallthru
          _
        %p269 = scmp.lt.s32.totalorder %s27, 1
        %s270 = scalar_select %p269, %s27, 1
        %s271 = smul.addr %s270, 4
        %s272 = scalar_lea.vmem %s0, %s271
        %p273 = pneg %p56
        %p274 = pneg %p53
        %p275 = pneg %p82
        %p276 = pneg %p79
        %p277 = pneg %p103
        %p278 = pneg %p100
        %p279 = pneg %p124
        %p280 = pneg %p121
        %s281 = sand.u32 %s139, 1
        %s282 = scalar_lea.sflag [#allocation6], %s281
        %s283 = sand.u32 %s139, 1
        %s284 = smul.addr %s283, 16
        %s285 = scalar_lea.vmem [#allocation5], %s284
        %p286 = pneg %p152
        %p287 = pneg %p149
        %p288 = pneg %p180
        %p289 = pneg %p177
        %s290 = sand.u32 %s167, 1
        %s291 = scalar_lea.sflag [#allocation4], %s290
        %s292 = sand.u32 %s167, 1
        %s293 = smul.addr %s292, 16
        %s294 = scalar_lea.vmem [#allocation7], %s293
        %p295 = scmp.lt.s32.totalorder %s27, 1
        %s296 = scalar_select %p295, %s27, 1
        %s297 = smul.addr %s296, 4
        %s298 = scalar_lea.vmem %s0, %s297
        %s299 = smul.u32 2, %s28
        %s300 = smul.u32 2, %s28
        %s301 = smul.u32 2, %s28
        %v302 = vld [vmem:[%s298] sm:$0xf]
        %v303 = vld [vmem:[#allocation2] sm:$0xff]
        %v304 = vld [vmem:[#allocation2 + $0x8] sm:$0xff]
        %v305 = vld [vmem:[#allocation2 + $0x10] sm:$0xff]
        %v306 = vld [vmem:[#allocation2 + $0x18] sm:$0xff]
        %v307 = vld [vmem:[#allocation2 + $0x20] sm:$0xff]
        %v308 = vld [vmem:[#allocation2 + $0x28] sm:$0xff]
        %v309 = vld [vmem:[#allocation2 + $0x30] sm:$0xff]
        %v310 = vld [vmem:[#allocation2 + $0x38] sm:$0xff]
        %v311 = vld [vmem:[#allocation2 + $0x40] sm:$0xff]
        %v312 = vld [vmem:[#allocation2 + $0x48] sm:$0xff]
        %v313 = vld [vmem:[#allocation2 + $0x50] sm:$0xff]
        %v314 = vld [vmem:[#allocation2 + $0x58] sm:$0xff]
        %v315 = vld [vmem:[#allocation2 + $0x60] sm:$0xff]
        %v316 = vld [vmem:[#allocation2 + $0x68] sm:$0xff]
        %v317 = vld [vmem:[#allocation2 + $0x70] sm:$0xff]
        %v318 = vld [vmem:[#allocation2 + $0x78] sm:$0xff]
        %vm319 = vcmask 523264
        %v321 = vsel %vm319, %v302, 0
        %323 = vmatprep.subr.mxu0 %v304
        %324 = vmatpush1.msra.mxu0 %v303
        %325 = vmatprep.subr.mxu0 %v306
        %326 = vmatpush1.msra.mxu0 %v305
        %327 = vmatprep.subr.mxu0 %v308
        %328 = vmatpush1.msra.mxu0 %v307
        %329 = vmatprep.subr.mxu0 %v310
        %330 = vmatpush1.msra.mxu0 %v309
        %331 = vmatprep.subr.mxu0 %v312
        %332 = vmatpush1.msra.mxu0 %v311
        %333 = vmatprep.subr.mxu0 %v314
        %334 = vmatpush1.msra.mxu0 %v313
        %335 = vmatprep.subr.mxu0 %v316
        %336 = vmatpush1.msra.mxu0 %v315
        %337 = vmatprep.subr.mxu0 %v318
        %338 = vmatpush1.msra.mxu0 %v317
        %339 = vmatprep.subr.mxu0 0.0
        %340 = vmatpush1.msra.mxu0 0.0
        %341 = vmatprep.subr.mxu0 0.0
        %342 = vmatpush1.msra.mxu0 0.0
        %343 = vmatprep.subr.mxu0 0.0
        %344 = vmatpush1.msra.mxu0 0.0
        %345 = vmatprep.subr.mxu0 0.0
        %346 = vmatpush1.msra.mxu0 0.0
        %347 = vmatprep.subr.mxu0 0.0
        %348 = vmatpush1.msra.mxu0 0.0
        %349 = vmatprep.subr.mxu0 0.0
        %350 = vmatpush1.msra.mxu0 0.0
        %351 = vmatprep.subr.mxu0 0.0
        %352 = vmatpush1.msra.mxu0 0.0
        %353 = vmatprep.subr.mxu0 0.0
        %354 = vmatpush1.msra.mxu0 0.0
        %355 = vmatprep.subr.mxu0 0.0
        %356 = vmatpush1.msra.mxu0 0.0
        %357 = vmatprep.subr.mxu0 0.0
        %358 = vmatpush1.msra.mxu0 0.0
        %359 = vmatprep.subr.mxu0 0.0
        %360 = vmatpush1.msra.mxu0 0.0
        %361 = vmatprep.subr.mxu0 0.0
        %362 = vmatpush1.msra.mxu0 0.0
        %363 = vmatprep.subr.mxu0 0.0
        %364 = vmatpush1.msra.mxu0 0.0
        %365 = vmatprep.subr.mxu0 0.0
        %366 = vmatpush1.msra.mxu0 0.0
        %367 = vmatprep.subr.mxu0 0.0
        %368 = vmatpush1.msra.mxu0 0.0
        %369 = vmatprep.subr.mxu0 0.0
        %370 = vmatpush1.msra.mxu0 0.0
        %371 = vmatprep.subr.mxu0 0.0
        %372 = vmatpush1.msra.mxu0 0.0
        %373 = vmatprep.subr.mxu0 0.0
        %374 = vmatpush1.msra.mxu0 0.0
        %375 = vmatprep.subr.mxu0 0.0
        %376 = vmatpush1.msra.mxu0 0.0
        %377 = vmatprep.subr.mxu0 0.0
        %378 = vmatpush1.msra.mxu0 0.0
        %379 = vmatprep.subr.mxu0 0.0
        %380 = vmatpush1.msra.mxu0 0.0
        %381 = vmatprep.subr.mxu0 0.0
        %382 = vmatpush1.msra.mxu0 0.0
        %383 = vmatprep.subr.mxu0 0.0
        %384 = vmatpush1.msra.mxu0 0.0
        %385 = vmatprep.subr.mxu0 0.0
        %386 = vmatpush1.msra.mxu0 0.0
        %387 = vmatprep.mubr.f32.mxu0 0.0
        %388 = vmatmul.mubr.f32.gmra.mrb[0].mxu0 %v321
        %v389 = vpop.f32.mrb[0].mxu0
        %v390 = vadd.f32 0.0, %v389
        %v391 = vpop.f32.mrb[0].mxu0
        %v392 = vadd.f32 0.0, %v391
        %393 = vdwg.mxu0
        %v394 = vld [vmem:[%s2] sm:$0xff]
        %v395 = vld [vmem:[%s3] sm:$0xff]
        %397 = vset.pattern.permute.xlu0 0
        %398 = vperm.xlu0 %397, %v395
        %v399 = vpop.permute.xlu0 %398
        %vm401 = vcmask 31744
        %v403 = vsel %vm401, %v394, 0
        %vm405 = vcmask 1043456
        %v407 = vsel %vm405, %v390, 0
        %v410 = vsel %vm405, %v392, 0
        %412 = vmatprep.subr.mxu0 %v410
        %413 = vmatpush1.msra.mxu0 %v407
        %414 = vmatprep.subr.mxu0 0.0
        %415 = vmatpush1.msra.mxu0 0.0
        %416 = vmatprep.subr.mxu0 0.0
        %417 = vmatpush1.msra.mxu0 0.0
        %418 = vmatprep.subr.mxu0 0.0
        %419 = vmatpush1.msra.mxu0 0.0
        %420 = vmatprep.subr.mxu0 0.0
        %421 = vmatpush1.msra.mxu0 0.0
        %422 = vmatprep.subr.mxu0 0.0
        %423 = vmatpush1.msra.mxu0 0.0
        %424 = vmatprep.subr.mxu0 0.0
        %425 = vmatpush1.msra.mxu0 0.0
        %426 = vmatprep.subr.mxu0 0.0
        %427 = vmatpush1.msra.mxu0 0.0
        %428 = vmatprep.subr.mxu0 0.0
        %429 = vmatpush1.msra.mxu0 0.0
        %430 = vmatprep.subr.mxu0 0.0
        %431 = vmatpush1.msra.mxu0 0.0
        %432 = vmatprep.subr.mxu0 0.0
        %433 = vmatpush1.msra.mxu0 0.0
        %434 = vmatprep.subr.mxu0 0.0
        %435 = vmatpush1.msra.mxu0 0.0
        %436 = vmatprep.subr.mxu0 0.0
        %437 = vmatpush1.msra.mxu0 0.0
        %438 = vmatprep.subr.mxu0 0.0
        %439 = vmatpush1.msra.mxu0 0.0
        %440 = vmatprep.subr.mxu0 0.0
        %441 = vmatpush1.msra.mxu0 0.0
        %442 = vmatprep.subr.mxu0 0.0
        %443 = vmatpush1.msra.mxu0 0.0
        %444 = vmatprep.subr.mxu0 0.0
        %445 = vmatpush1.msra.mxu0 0.0
        %446 = vmatprep.subr.mxu0 0.0
        %447 = vmatpush1.msra.mxu0 0.0
        %448 = vmatprep.subr.mxu0 0.0
        %449 = vmatpush1.msra.mxu0 0.0
        %450 = vmatprep.subr.mxu0 0.0
        %451 = vmatpush1.msra.mxu0 0.0
        %452 = vmatprep.subr.mxu0 0.0
        %453 = vmatpush1.msra.mxu0 0.0
        %454 = vmatprep.subr.mxu0 0.0
        %455 = vmatpush1.msra.mxu0 0.0
        %456 = vmatprep.subr.mxu0 0.0
        %457 = vmatpush1.msra.mxu0 0.0
        %458 = vmatprep.subr.mxu0 0.0
        %459 = vmatpush1.msra.mxu0 0.0
        %460 = vmatprep.subr.mxu0 0.0
        %461 = vmatpush1.msra.mxu0 0.0
        %462 = vmatprep.subr.mxu0 0.0
        %463 = vmatpush1.msra.mxu0 0.0
        %464 = vmatprep.subr.mxu0 0.0
        %465 = vmatpush1.msra.mxu0 0.0
        %466 = vmatprep.subr.mxu0 0.0
        %467 = vmatpush1.msra.mxu0 0.0
        %468 = vmatprep.subr.mxu0 0.0
        %469 = vmatpush1.msra.mxu0 0.0
        %470 = vmatprep.subr.mxu0 0.0
        %471 = vmatpush1.msra.mxu0 0.0
        %472 = vmatprep.subr.mxu0 0.0
        %473 = vmatpush1.msra.mxu0 0.0
        %474 = vmatprep.subr.mxu0 0.0
        %475 = vmatpush1.msra.mxu0 0.0
        %476 = vmatprep.mubr.f32.mxu0 0.0
        %477 = vmatmul.mubr.f32.gmra.mrb[0].mxu0 %v403
        %v478 = vpop.f32.mrb[0].mxu0
        %v479 = vadd.f32 %v399, %v478
        %v480 = vpop.f32.mrb[0].mxu0
        %v481 = vadd.f32 %v399, %v480
        %482 = vdwg.mxu0
        %v483 = vld [vmem:[%s264] sm:$0xff]
        %v484 = vld [vmem:[%s264 + $0x8] sm:$0xff]
        %v485 = vadd.f32 %v479, %v483
        %v486 = vadd.f32 %v481, %v484
        %487 = vst [vmem:[%s294] sm:$0xff] %v485
        %488 = vst [vmem:[%s294 + $0x8] sm:$0xff] %v486
        %s489 = sand.u32 %s167, 1
        %s490 = scalar_lea.sflag [#allocation4], %s489
        %s491 = sand.u32 %s167, 1
        %s492 = smul.addr %s491, 16
        %s493 = scalar_lea.vmem [#allocation7], %s492
        // Predicated region
        $region49: #{tpu_custom_call.1} parent=39 // pred_check
          %p494 = pneg %p177
        $region50: #{tpu_custom_call.1} parent=39 // pred_check_branch
          %496 = sbr.rel (%p494) target = $region52
        $region51: #{tpu_custom_call.1} parent=39 // pred_region
          %s497 = smul.u32 2, %s28
          %s499 = ssub.s32 256, 256
          %500 = vsyncadd %s490, %s499
          %s501 = smul.addr %s27, 2
          %s502 = sadd.s32 %s497, %s501
          %s503 = smul.addr %s502, 128
          %s504 = scalar_lea.hbm %s5, %s503
          %s506 = sshll.u32 %s493, 4
          %s507 = int_to_ptr.vmem [resolvable:$true] %s506
          %509 = dma.vmem_to_hbm [thread:$0]  %s507, 256, %s504, %s490
        $region52: #{tpu_custom_call.1} parent=39 // pred_fallthru
          _
      $region40: #{tpu_custom_call.1} parent=5 // pred_fallthru
        _
      %p510 = scmp.le.s32.totalorder 2, %s18
      // Predicated region
      $region53: #{tpu_custom_call.1} parent=5 // pred_check
        %p511 = pneg %p510
      $region54: #{tpu_custom_call.1} parent=5 // pred_check_branch
        %513 = sbr.rel (%p511) target = $region56
      $region55: #{tpu_custom_call.1} parent=5 // pred_region
        %s514 = ssub.s32 %s18, 2
        // Predicated region
        $region57: #{tpu_custom_call.1} parent=55 // pred_check
          %p515 = pneg %p183
        $region58: #{tpu_custom_call.1} parent=55 // pred_check_branch
          %517 = sbr.rel (%p515) target = $region60
        $region59: #{tpu_custom_call.1} parent=55 // pred_region
          %s518 = sand.u32 %s168, 1
          %s519 = scalar_lea.sflag [#allocation4], %s518
          %s520 = sand.u32 %s168, 1
          %s521 = smul.addr %s520, 16
          %s522 = scalar_lea.vmem [#allocation7], %s521
          %523 = dma.done %s519, 256
        $region60: #{tpu_custom_call.1} parent=55 // pred_fallthru
          _
      $region56: #{tpu_custom_call.1} parent=5 // pred_fallthru
        _
    $region6: #{tpu_custom_call.1} parent=1 // loop_footer
      %s22 = sadd.s32 1, %s18
    $region7: #{tpu_custom_call.1} parent=1 // loop_footer_branch
      %17 = sbr.rel target = $region3
    $region8: #{tpu_custom_call.1} parent=1 // loop_exit
      _
    %524 = vsyncpa [#allocation3], 1
    %s525 = scalar_lea.sflag [#allocation3], 1
    %526 = vsyncpa %s525, 1
    %527 = vsyncpa [#allocation6], 1
    %s528 = scalar_lea.sflag [#allocation6], 1
    %529 = vsyncpa %s528, 1
    %530 = vsyncpa [#allocation4], 1
    %s531 = scalar_lea.sflag [#allocation4], 1
    %532 = vsyncpa %s531, 1

</llo_original>
